<compile_context>
chip_gen: v5e
topology: v5e:2x2
jax: 0.10.0
libtpu: 0.0.40
codegen_flags: <defaults>
</compile_context>

<pallas_src>
import functools
import math

import jax
import jax.numpy as jnp
from jax.experimental import pallas as pl
from jax.experimental.pallas import tpu as pltpu


_MAX_STREAMS_PER_INPUT = 8          # cap on concurrent DMA streams per input
_MIN_DMA_CHUNK_BYTES = 512 * 1024   # don't split inputs smaller than this per chunk
_MIN_PALLAS_BYTES = 256 * 1024      # below this, XLA's fused native concat wins


def _even_splits(total, parts):
    """Split range [0, total) into `parts` near-equal (start, size) chunks."""
    if total <= 0:
        return []
    parts = max(1, min(total, parts))
    base, rem = divmod(total, parts)
    out, start = [], 0
    for p in range(parts):
        n = base + (1 if p < rem else 0)
        out.append((start, n))
        start += n
    return out


def _concat_dma_kernel(*refs, dma_plan, n_in):
    """HBM->HBM concat: DMA each input chunk into its slot in the output."""
    in_refs = refs[:n_in]
    o_ref = refs[n_in]
    sem = refs[n_in + 1]

    copies = []
    for s, (i, r0, nrows, c0, ncols, out_c0) in enumerate(dma_plan):
        cp = pltpu.make_async_copy(
            in_refs[i].at[pl.ds(r0, nrows), pl.ds(c0, ncols)],
            o_ref.at[pl.ds(r0, nrows), pl.ds(out_c0, ncols)],
            sem.at[s],
        )
        cp.start()
        copies.append(cp)
    # All copies target disjoint output regions; wait for every stream.
    for cp in copies:
        cp.wait()


def merger(*tensors, dim: int = 1, use_pallas=None):
    """torch.cat(tensors, dim) as a Pallas TPU kernel (pure DMA, HBM roofline)."""
    assert len(tensors) >= 1
    if len(tensors) == 1:
        return tensors[0]

    ndim = tensors[0].ndim
    dim = dim % ndim
    dtype = tensors[0].dtype
    for t in tensors:
        assert t.ndim == ndim and t.dtype == dtype, "dtypes/ranks must match"
        assert t.shape[:dim] == tensors[0].shape[:dim], "non-concat dims must match"
        assert t.shape[dim + 1:] == tensors[0].shape[dim + 1:], "non-concat dims must match"

    out_shape = list(tensors[0].shape)
    out_shape[dim] = sum(t.shape[dim] for t in tensors)
    out_shape = tuple(out_shape)

    itemsize = jnp.dtype(dtype).itemsize
    out_bytes = math.prod(out_shape) * itemsize
    if use_pallas is None:
        use_pallas = out_bytes >= _MIN_PALLAS_BYTES

    # Flatten to lane-dense 2D: rows = dims before `dim`, cols = dims from `dim` on.
    rows = math.prod(tensors[0].shape[:dim])  # == 1 for dim == 0
    col_sizes = tuple(math.prod(t.shape[dim:]) for t in tensors)
    f_total = sum(col_sizes)

    if (not use_pallas) or rows == 0 or f_total == 0:
        # Small / degenerate fallback: launch overhead dominates below ~256 KiB.
        return jnp.concatenate(tensors, axis=dim)

    col_offsets, acc = [], 0
    for cs in col_sizes:
        col_offsets.append(acc)
        acc += cs
    flats = [t.reshape(rows, cs) for t, cs in zip(tensors, col_sizes)]

    # Build a static DMA plan: split each input into a few rectangles so several
    # DMA streams are in flight, chunking rows first and columns if rows are few.
    dma_plan = []
    for i, cs in enumerate(col_sizes):
        if cs == 0:
            continue  # nothing to copy for this input
        in_bytes = rows * cs * itemsize
        n_chunks = max(1, min(_MAX_STREAMS_PER_INPUT,
                              in_bytes // _MIN_DMA_CHUNK_BYTES))
        row_splits = _even_splits(rows, n_chunks)
        col_parts = max(1, n_chunks // len(row_splits))
        col_splits = _even_splits(cs, col_parts)
        for (r0, nrows) in row_splits:
            for (c0, ncols) in col_splits:
                dma_plan.append((i, r0, nrows, c0, ncols, col_offsets[i] + c0))
    dma_plan = tuple(dma_plan)

    kernel = functools.partial(
        _concat_dma_kernel, dma_plan=dma_plan, n_in=len(tensors))

    out2d = pl.pallas_call(
        kernel,
        out_shape=jax.ShapeDtypeStruct((rows, f_total), dtype),
        in_specs=[pl.BlockSpec(memory_space=pl.ANY)] * len(tensors),
        out_specs=pl.BlockSpec(memory_space=pl.ANY),
        scratch_shapes=[pltpu.SemaphoreType.DMA((len(dma_plan),))],
        cost_estimate=pl.CostEstimate(
            flops=0, transcendentals=0, bytes_accessed=2 * out_bytes),
    )(*flats)

    return out2d.reshape(out_shape)


if __name__ == "__main__":
    key = jax.random.PRNGKey(0)
    k1, k2, k3, k4, k5 = jax.random.split(key, 5)

    # Small NCHW shapes consistent with the module's typical use (dim=1).
    x1 = jax.random.normal(k1, (2, 4, 16, 16), dtype=jnp.float32)
    x2 = jax.random.normal(k2, (2, 4, 16, 16), dtype=jnp.float32)

    out = merger(x1, x2, use_pallas=True)  # force the Pallas path at demo size
    jax.block_until_ready(out)
    ref = jnp.concatenate((x1, x2), axis=1)
    assert out.shape == ref.shape == (2, 8, 16, 16)
    assert out.dtype == ref.dtype
    assert bool(jnp.array_equal(out, ref))

    # Variadic concat with unequal channel counts, still dim=1.
    x3 = jax.random.normal(k3, (2, 6, 16, 16), dtype=jnp.float32)
    out3 = merger(x1, x3, x2, use_pallas=True)
    jax.block_until_ready(out3)
    ref3 = jnp.concatenate((x1, x3, x2), axis=1)
    assert out3.shape == ref3.shape == (2, 14, 16, 16)
    assert bool(jnp.array_equal(out3, ref3))

    # Last-axis concat (rows > 1, per-row column offsets in the output).
    y1 = jax.random.normal(k4, (2, 4, 8, 128), dtype=jnp.float32)
    y2 = jax.random.normal(k5, (2, 4, 8, 64), dtype=jnp.float32)
    out4 = merger(y1, y2, dim=3, use_pallas=True)
    jax.block_until_ready(out4)
    ref4 = jnp.concatenate((y1, y2), axis=3)
    assert out4.shape == ref4.shape == (2, 4, 8, 192)
    assert bool(jnp.array_equal(out4, ref4))

    print("KERNEL_OK")
</pallas_src>

<mosaic_0001>
module attributes {stable_mosaic.version = 11 : i64} {
  func.func @_concat_dma_kernel(%arg0: memref<2x1024xf32, #tpu.memory_space<any>>, %arg1: memref<2x1024xf32, #tpu.memory_space<any>>, %arg2: memref<2x2048xf32, #tpu.memory_space<any>>, %arg3: memref<2x!tpu.dma_semaphore, #tpu.memory_space<semaphore_mem>>) attributes {dimension_semantics = [], scalar_prefetch = 0 : i64, scratch_operands = 1 : i64, tpu.core_type = #tpu.core_type<tc>} {
    %c0_i32 = arith.constant 0 : i32
    %c0_i32_0 = arith.constant 0 : i32
    %c0_i32_1 = arith.constant 0 : i32
    %0 = tpu.memref_slice %arg0[%c0_i32_0, %c0_i32_1] : memref<2x1024xf32, #tpu.memory_space<any>> -> memref<2x1024xf32, #tpu.memory_space<any>>
    %c0_i32_2 = arith.constant 0 : i32
    %c0_i32_3 = arith.constant 0 : i32
    %1 = tpu.memref_slice %arg2[%c0_i32_2, %c0_i32_3] : memref<2x2048xf32, #tpu.memory_space<any>> -> memref<2x1024xf32, #tpu.memory_space<any>>
    %2 = tpu.memref_slice %arg3[%c0_i32] : memref<2x!tpu.dma_semaphore, #tpu.memory_space<semaphore_mem>> -> memref<1x!tpu.dma_semaphore, #tpu.memory_space<semaphore_mem>>
    %3 = tpu.memref_squeeze %2 : memref<1x!tpu.dma_semaphore, #tpu.memory_space<semaphore_mem>> -> memref<!tpu.dma_semaphore, #tpu.memory_space<semaphore_mem>>
    tpu.enqueue_dma source(%0 : memref<2x1024xf32, #tpu.memory_space<any>>) target(%1 : memref<2x1024xf32, #tpu.memory_space<any>>) target_semaphore(%3 : memref<!tpu.dma_semaphore, #tpu.memory_space<semaphore_mem>>)
    %c1_i32 = arith.constant 1 : i32
    %c0_i32_4 = arith.constant 0 : i32
    %c0_i32_5 = arith.constant 0 : i32
    %4 = tpu.memref_slice %arg1[%c0_i32_4, %c0_i32_5] : memref<2x1024xf32, #tpu.memory_space<any>> -> memref<2x1024xf32, #tpu.memory_space<any>>
    %c0_i32_6 = arith.constant 0 : i32
    %c1024_i32 = arith.constant 1024 : i32
    %5 = tpu.memref_slice %arg2[%c0_i32_6, %c1024_i32] : memref<2x2048xf32, #tpu.memory_space<any>> -> memref<2x1024xf32, #tpu.memory_space<any>>
    %6 = tpu.memref_slice %arg3[%c1_i32] : memref<2x!tpu.dma_semaphore, #tpu.memory_space<semaphore_mem>> -> memref<1x!tpu.dma_semaphore, #tpu.memory_space<semaphore_mem>>
    %7 = tpu.memref_squeeze %6 : memref<1x!tpu.dma_semaphore, #tpu.memory_space<semaphore_mem>> -> memref<!tpu.dma_semaphore, #tpu.memory_space<semaphore_mem>>
    tpu.enqueue_dma source(%4 : memref<2x1024xf32, #tpu.memory_space<any>>) target(%5 : memref<2x1024xf32, #tpu.memory_space<any>>) target_semaphore(%7 : memref<!tpu.dma_semaphore, #tpu.memory_space<semaphore_mem>>)
    %c0_i32_7 = arith.constant 0 : i32
    %c0_i32_8 = arith.constant 0 : i32
    %c0_i32_9 = arith.constant 0 : i32
    %8 = tpu.memref_slice %arg0[%c0_i32_8, %c0_i32_9] : memref<2x1024xf32, #tpu.memory_space<any>> -> memref<2x1024xf32, #tpu.memory_space<any>>
    %c0_i32_10 = arith.constant 0 : i32
    %c0_i32_11 = arith.constant 0 : i32
    %9 = tpu.memref_slice %arg2[%c0_i32_10, %c0_i32_11] : memref<2x2048xf32, #tpu.memory_space<any>> -> memref<2x1024xf32, #tpu.memory_space<any>>
    %10 = tpu.memref_slice %arg3[%c0_i32_7] : memref<2x!tpu.dma_semaphore, #tpu.memory_space<semaphore_mem>> -> memref<1x!tpu.dma_semaphore, #tpu.memory_space<semaphore_mem>>
    %11 = tpu.memref_squeeze %10 : memref<1x!tpu.dma_semaphore, #tpu.memory_space<semaphore_mem>> -> memref<!tpu.dma_semaphore, #tpu.memory_space<semaphore_mem>>
    tpu.wait_dma2 semaphore(%11 : memref<!tpu.dma_semaphore, #tpu.memory_space<semaphore_mem>>) src(%8 : memref<2x1024xf32, #tpu.memory_space<any>>) dst(%9 : memref<2x1024xf32, #tpu.memory_space<any>>)
    %c1_i32_12 = arith.constant 1 : i32
    %c0_i32_13 = arith.constant 0 : i32
    %c0_i32_14 = arith.constant 0 : i32
    %12 = tpu.memref_slice %arg1[%c0_i32_13, %c0_i32_14] : memref<2x1024xf32, #tpu.memory_space<any>> -> memref<2x1024xf32, #tpu.memory_space<any>>
    %c0_i32_15 = arith.constant 0 : i32
    %c1024_i32_16 = arith.constant 1024 : i32
    %13 = tpu.memref_slice %arg2[%c0_i32_15, %c1024_i32_16] : memref<2x2048xf32, #tpu.memory_space<any>> -> memref<2x1024xf32, #tpu.memory_space<any>>
    %14 = tpu.memref_slice %arg3[%c1_i32_12] : memref<2x!tpu.dma_semaphore, #tpu.memory_space<semaphore_mem>> -> memref<1x!tpu.dma_semaphore, #tpu.memory_space<semaphore_mem>>
    %15 = tpu.memref_squeeze %14 : memref<1x!tpu.dma_semaphore, #tpu.memory_space<semaphore_mem>> -> memref<!tpu.dma_semaphore, #tpu.memory_space<semaphore_mem>>
    tpu.wait_dma2 semaphore(%15 : memref<!tpu.dma_semaphore, #tpu.memory_space<semaphore_mem>>) src(%12 : memref<2x1024xf32, #tpu.memory_space<any>>) dst(%13 : memref<2x1024xf32, #tpu.memory_space<any>>)
    return
  }
}

</mosaic_0001>

<llo_original>
// kernel: tpu_custom_call.1
$region0: #{tpu_custom_call.1}
  #allocation0 [shape = 'u32[]', space=smem, size = 0x4, offset = 0x4, fixed_abs, tag = 'smem constant byte address 0x4 - core index']
  #allocation1 [shape = 'u32[72,128]{1,0:T(1,128)}', space=vmem, size = 0x9000, scoped, tag = 'internal scratch']
  #allocation2 [shape = 's32[2]{0}', space=sflag, size = 0x8, scoped, tag = 'scratch operand']
  #allocation3 [shape = 's32[]', space=sflag, size = 0x4, offset = 0, fixed_abs, tag = 'sflag constant byte address 0x0 - dummy sync flag']
  #allocation4 [shape = 'u32[0]{0}', space=smem, size = 0, offset = 0, fixed_abs, tag = 'smem constant byte address 0x0 - null']
  #allocation5 [shape = 's32[]', space=sflag, size = 0x4, offset = 0, fixed_abs, tag = 'sflag constant byte address 0x0 - dummy sync flag']
  #allocation6 [shape = 'u32[0]{0}', space=smem, size = 0, offset = 0, fixed_abs, tag = 'smem constant byte address 0x0 - null']
  %s0 = inlined_call_operand.hbm [shape: f32[2,1024], index: 0, kind: input, shape index: {}]
  %s1 = inlined_call_operand.hbm [shape: f32[2,1024], index: 1, kind: input, shape index: {}]
  %s2 = inlined_call_operand.hbm [shape: f32[2,2048], index: 2, kind: output, shape index: {}]
  %s3 = sld [smem:[#allocation0]]
  $region2: #{tpu_custom_call.1} parent=0
    _
  %s5 = ssub.s32 1, %s3
  %s6 = scalar_select 0, %s5, %s3
  %s8 = sshll.u32 1, 14
  %s9 = sxor.u32 4294967295, %s8
  %s11 = sshll.u32 %s0, 4
  %s12 = int_to_ptr.hbm [resolvable:$true] %s11
  %s13 = sshll.u32 %s2, 4
  %s14 = int_to_ptr.hbm [resolvable:$true] %s13
  %17 = dma.general %s12, 256, %s14, [#allocation2], [#allocation3], [#allocation4], 0, 0
  %s18 = scalar_lea.hbm %s2, 16
  %s19 = scalar_lea.sflag [#allocation2], 1
  %s21 = sshll.u32 1, 14
  %s22 = sxor.u32 4294967295, %s21
  %s24 = sshll.u32 %s1, 4
  %s25 = int_to_ptr.hbm [resolvable:$true] %s24
  %s26 = sshll.u32 %s18, 4
  %s27 = int_to_ptr.hbm [resolvable:$true] %s26
  %30 = dma.general %s25, 256, %s27, %s19, [#allocation5], [#allocation6], 0, 0
  %s31 = smul.u32 2, 1
  %s32 = smul.u32 %s31, 8
  %s33 = sshll.u32 %s32, 4
  %34 = dma.done [#allocation2], %s33
  %s35 = sshll.u32 %s32, 4
  %36 = dma.done %s19, %s35
  %37 = vsyncmov [#allocation2]
  %s38 = vpop.sfrf %37
  %p39 = scmp.eq.s32.totalorder %s38, 0
  %p40 = pneg %p39
  %42 = shalt.err (%p40)
  %s43 = scalar_lea.sflag [#allocation2], 1
  %44 = vsyncmov %s43
  %s45 = vpop.sfrf %44
  %p46 = scmp.eq.s32.totalorder %s45, 0
  %p47 = pneg %p46
  %49 = shalt.err (%p47)

</llo_original>
